<compile_context>
chip_gen: v5e
topology: v5e:2x2
jax: 0.10.0
libtpu: 0.0.40
codegen_flags: <defaults>
</compile_context>

<pallas_src>
import math

import jax
import jax.numpy as jnp
from jax.experimental import pallas as pl
from jax.experimental.pallas import tpu as pltpu

_LANES = 128
_COMPUTE_DTYPE = jnp.bfloat16   # MXU operand dtype; accumulation stays f32


def _round_up(x, m):
    return (x + m - 1) // m * m


def _wsconv_matmul_kernel(p_ref, w_ref, b_ref, o_ref):
    # p_ref : (tile_m, K*K*C_in)    bf16 im2col patch tile
    # w_ref : (K*K*C_in, C_out_pad) bf16 scale-folded weights (resident)
    # b_ref : (1, C_out_pad)        f32 bias (resident)
    # o_ref : (tile_m, C_out_pad)   f32 lane-dense output tile
    acc = jnp.dot(p_ref[...], w_ref[...], preferred_element_type=jnp.float32)
    o_ref[...] = acc + b_ref[...]          # bias folded into the epilogue store


def ws_conv2d(x_nchw, weight_oikk, bias, *, stride=1, padding=1, tile_m=128):
    """WSConv2d forward. x_nchw: (N, C_in, H, W) f32. Returns (N, C_out, H_out, W_out) f32.

    tile_m: rows per grid step.  128 keeps several pipelined/parallel grid steps
    at demo shapes; raise to 512+ for large inputs (bigger tiles = closer to
    HBM roofline).  All tiles fit comfortably in v7x's 64 MiB VMEM.
    """
    assert stride == 1, "kernel implements stride=1 (module default)"
    N, C_in, H, W = x_nchw.shape
    C_out, C_in_w, K, K2 = weight_oikk.shape
    assert C_in == C_in_w and K == K2

    scale = math.sqrt(2.0 / (C_in * K * K))
    H_out = H + 2 * padding - K + 1
    W_out = W + 2 * padding - K + 1

    # ---- wrapper-side layout plumbing (no arithmetic on the activations) ----
    x_nhwc = jnp.transpose(x_nchw, (0, 2, 3, 1))                           # NCHW -> NHWC
    x_pad = jnp.pad(x_nhwc, ((0, 0), (padding, padding), (padding, padding), (0, 0)))

    # im2col: K*K shifted views concatenated on the channel axis -> (M, K*K*C_in)
    taps = [x_pad[:, kh:kh + H_out, kw:kw + W_out, :]
            for kh in range(K) for kw in range(K)]
    patches = jnp.concatenate(taps, axis=-1).reshape(N * H_out * W_out, K * K * C_in)

    # Fold the WS scale into the weights (conv(x*s, w) == conv(x, w*s));
    # OIHW -> (K*K*C_in, C_out), then zero-pad C_out to a lane-dense 128 multiple.
    w_mat = jnp.transpose(weight_oikk, (2, 3, 1, 0)).reshape(K * K * C_in, C_out) * scale
    C_out_pad = _round_up(C_out, _LANES)
    w_mat = jnp.pad(w_mat, ((0, 0), (0, C_out_pad - C_out)))
    b_row = jnp.pad(bias.reshape(1, C_out).astype(jnp.float32),
                    ((0, 0), (0, C_out_pad - C_out)))

    # Pad rows to a multiple of the row tile (extra rows are zeros, sliced off below).
    M = N * H_out * W_out
    KD = K * K * C_in
    tile_m = max(8, min(tile_m, _round_up(M, 8)))
    M_pad = _round_up(M, tile_m)
    patches = jnp.pad(patches, ((0, M_pad - M), (0, 0)))

    # bf16 MXU operands (halves HBM/VMEM bytes); accumulation is f32 in-kernel.
    patches = patches.astype(_COMPUTE_DTYPE)
    w_mat = w_mat.astype(_COMPUTE_DTYPE)

    grid = (M_pad // tile_m,)
    out = pl.pallas_call(
        _wsconv_matmul_kernel,
        out_shape=jax.ShapeDtypeStruct((M_pad, C_out_pad), jnp.float32),
        grid_spec=pltpu.PrefetchScalarGridSpec(
            num_scalar_prefetch=0,
            grid=grid,
            in_specs=[
                pl.BlockSpec((tile_m, KD), lambda m: (m, 0)),      # activation tile (pipelined)
                pl.BlockSpec((KD, C_out_pad), lambda m: (0, 0)),   # weights: constant block -> resident
                pl.BlockSpec((1, C_out_pad), lambda m: (0, 0)),    # bias: constant block -> resident
            ],
            out_specs=pl.BlockSpec((tile_m, C_out_pad), lambda m: (m, 0)),
        ),
        compiler_params=pltpu.CompilerParams(
            dimension_semantics=("parallel",),        # pipelining + v7x 2-TC megacore split
            vmem_limit_bytes=32 * 1024 * 1024,        # explicit, safe on v5e/v6e/v7x
        ),
    )(patches, w_mat, b_row)

    out = out[:M, :C_out].reshape(N, H_out, W_out, C_out)                 # drop lane/row padding
    return jnp.transpose(out, (0, 3, 1, 2))                               # NHWC -> NCHW


def _reference(x_nchw, weight_oikk, bias, *, padding=1):
    scale = math.sqrt(2.0 / (weight_oikk.shape[1] * weight_oikk.shape[2] * weight_oikk.shape[3]))
    y = jax.lax.conv_general_dilated(
        x_nchw * scale, weight_oikk,
        window_strides=(1, 1),
        padding=((padding, padding), (padding, padding)),
        dimension_numbers=("NCHW", "OIHW", "NCHW"),
    )
    return y + bias.reshape(1, -1, 1, 1)


if __name__ == "__main__":
    # Module params: in_ch=4, out_ch=8, kernel=3, stride=1, padding=1
    in_ch, out_ch, kernel_size = 4, 8, 3
    N, H, W = 2, 16, 16

    key = jax.random.PRNGKey(0)
    kx, kw = jax.random.split(key)
    x = jax.random.normal(kx, (N, in_ch, H, W), dtype=jnp.float32)
    # nn.init.normal_(weight, 0, 1); nn.init.zeros_(bias)
    weight = jax.random.normal(kw, (out_ch, in_ch, kernel_size, kernel_size), dtype=jnp.float32)
    bias = jnp.zeros((out_ch,), dtype=jnp.float32)

    y = ws_conv2d(x, weight, bias)
    y = jax.block_until_ready(y)

    y_ref = _reference(x, weight, bias)
    assert y.shape == (N, out_ch, H, W), y.shape
    # bf16 MXU operands with f32 accumulation -> tolerance sized for bf16 mantissa.
    max_err = float(jnp.max(jnp.abs(y - y_ref)))
    assert jnp.allclose(y, y_ref, atol=5e-2, rtol=5e-2), max_err

    print("KERNEL_OK")
</pallas_src>

<mosaic_0001>
module attributes {stable_mosaic.version = 11 : i64} {
  func.func @_wsconv_matmul_kernel(%arg0: i32, %arg1: memref<128x36xbf16, #tpu.memory_space<vmem>>, %arg2: memref<36x128xbf16, #tpu.memory_space<vmem>>, %arg3: memref<1x128xf32, #tpu.memory_space<vmem>>, %arg4: memref<128x128xf32, #tpu.memory_space<vmem>>) attributes {dimension_semantics = [#tpu.dimension_semantics<parallel>], iteration_bounds = array<i64: 4>, scalar_prefetch = 0 : i64, scratch_operands = 0 : i64, tpu.core_type = #tpu.core_type<tc>, window_params = [{transform_indices = @transform_0, window_bounds = array<i64: 128, 36>}, {pipeline_mode = #tpu.pipeline_mode<synchronous>, transform_indices = @transform_1, window_bounds = array<i64: 36, 128>}, {pipeline_mode = #tpu.pipeline_mode<synchronous>, transform_indices = @transform_2, window_bounds = array<i64: 1, 128>}, {transform_indices = @transform_3, window_bounds = array<i64: 128, 128>}]} {
    %c0 = arith.constant 0 : index
    %c0_0 = arith.constant 0 : index
    %0 = vector.load %arg1[%c0, %c0_0] : memref<128x36xbf16, #tpu.memory_space<vmem>>, vector<128x36xbf16>
    %c0_1 = arith.constant 0 : index
    %c0_2 = arith.constant 0 : index
    %1 = vector.load %arg2[%c0_1, %c0_2] : memref<36x128xbf16, #tpu.memory_space<vmem>>, vector<36x128xbf16>
    %cst = arith.constant dense<0.000000e+00> : vector<128x128xf32>
    %2 = tpu.matmul %0, %1, %cst {dimension_numbers = #tpu.dot_dimension_numbers<[1], [0], [0], [1], [0, 0, 1, 1], [], []>} : vector<128x36xbf16>, vector<36x128xbf16>, vector<128x128xf32> -> vector<128x128xf32>
    %c0_3 = arith.constant 0 : index
    %c0_4 = arith.constant 0 : index
    %3 = vector.load %arg3[%c0_3, %c0_4] : memref<1x128xf32, #tpu.memory_space<vmem>>, vector<1x128xf32>
    %4 = vector.broadcast %3 : vector<1x128xf32> to vector<128x128xf32>
    %5 = arith.addf %2, %4 : vector<128x128xf32>
    %c0_5 = arith.constant 0 : index
    %c0_6 = arith.constant 0 : index
    %6 = vector.load %arg4[%c0_5, %c0_6] : memref<128x128xf32, #tpu.memory_space<vmem>>, vector<128x128xf32>
    tpu.vector_store %arg4[%c0_5, %c0_6], %5 {strides = array<i32>} : memref<128x128xf32, #tpu.memory_space<vmem>>, vector<128x128xf32>,
    return
  }
  func.func @transform_0(%arg0: i32) -> (i32, i32) {
    %c0_i32 = arith.constant 0 : i32
    %c0_i32_0 = arith.constant 0 : i32
    return %arg0, %c0_i32 : i32, i32
  }
  func.func @transform_1(%arg0: i32) -> (i32, i32) {
    %c0_i32 = arith.constant 0 : i32
    %c0_i32_0 = arith.constant 0 : i32
    %c0_i32_1 = arith.constant 0 : i32
    return %c0_i32, %c0_i32_0 : i32, i32
  }
  func.func @transform_2(%arg0: i32) -> (i32, i32) {
    %c0_i32 = arith.constant 0 : i32
    %c0_i32_0 = arith.constant 0 : i32
    %c0_i32_1 = arith.constant 0 : i32
    return %c0_i32, %c0_i32_0 : i32, i32
  }
  func.func @transform_3(%arg0: i32) -> (i32, i32) {
    %c0_i32 = arith.constant 0 : i32
    %c0_i32_0 = arith.constant 0 : i32
    return %arg0, %c0_i32 : i32, i32
  }
}

</mosaic_0001>

<llo_original>
// kernel: tpu_custom_call.1
$region0: #{tpu_custom_call.1}
  #allocation0 [shape = 'u32[]', space=smem, size = 0x4, offset = 0x4, fixed_abs, tag = 'smem constant byte address 0x4 - core index']
  #allocation1 [shape = 'u32[72,128]{1,0:T(1,128)}', space=vmem, size = 0x9000, scoped, tag = 'internal scratch']
  %s0 = inlined_call_operand.vmem [shape: bf16[512,36], index: 0, kind: input, shape index: {}]
  %s1 = inlined_call_operand.vmem [shape: bf16[36,128], index: 1, kind: input, shape index: {}]
  %s2 = inlined_call_operand.vmem [shape: f32[1,128], index: 2, kind: input, shape index: {}]
  %s3 = inlined_call_operand.hbm [shape: f32[512,128], index: 3, kind: output, shape index: {}]
  %s4 = sld [smem:[#allocation0]]
  $region45: #{tpu_custom_call.1} parent=0
    _
  %s6 = ssub.s32 1, %s4
  %s7 = scalar_select 0, %s6, %s4
  $region1: #{tpu_custom_call.1} parent=0
    #allocation2 [shape = 'u8[131072]{0}', space=vmem, size = 0x20000, scoped, tag = 'output window, operand 0']
    #allocation3 [shape = 's32[2]{0}', space=sflag, size = 0x8, scoped, tag = 'scoped memory for tpu_custom_call.1']
    %8 = vsyncpa [#allocation3], 0
    %s9 = scalar_lea.sflag [#allocation3], 1
    %10 = vsyncpa %s9, 0
    loop: start=0, step=1, limit=6
    $region2: #{tpu_custom_call.1} parent=1 // loop_pre_header
      _
    $region3: #{tpu_custom_call.1} parent=1 // loop_header
      %s12 = sphi 0, %s16
      %p13 = scmp.ge.s32.totalorder %s12, 6
      %s22 = sphi 0, %s24
      %s25 = sphi 0, %s22
      %s26 = sphi 0, %s25
      %s42 = sphi 0, %s26
      %s46 = sphi 0, %s46
      %s48 = sphi 0, %s46
      %s49 = sphi 0, %s48
      %s63 = sphi 0, %s49
      %s67 = sphi 0, %s67
      %s69 = sphi 0, %s67
      %s70 = sphi 0, %s69
      %s84 = sphi 0, %s70
      %s90 = sphi 0, %s92
      %s93 = sphi 0, %s90
      %s94 = sphi 0, %s93
      %s110 = sphi 0, %s94
    $region4: #{tpu_custom_call.1} parent=1 // loop_header_branch
      %15 = sbr.rel (%p13) target = $region8
    $region5: #{tpu_custom_call.1} parent=1 // loop_body
      %s17 = ssub.s32 %s12, 1
      %s18 = ssub.s32 %s12, 2
      %s19 = sadd.s32 %s12, 1
      %s20 = ssub.s32 %s12, %s19
      %p21 = scmp.eq.s32.totalorder %s20, 0
      %s23 = sadd.s32 %s22, 1
      %s24 = scalar_select %p21, %s22, %s23
      %p27 = pneg %p21
      %p28 = scmp.eq.s32.totalorder %s12, 3
      %p29 = por %p27, %p28
      %p30 = scmp.ne.s32.totalorder %s22, %s25
      %p31 = scmp.eq.s32.totalorder %s12, 0
      %p32 = por %p30, %p31
      %p33 = scmp.ne.s32.totalorder %s22, %s25
      %p34 = scmp.eq.s32.totalorder %s17, 3
      %p35 = por %p33, %p34
      %p36 = scmp.ne.s32.totalorder %s25, %s26
      %p37 = scmp.eq.s32.totalorder %s17, 0
      %p38 = por %p36, %p37
      %p39 = scmp.ne.s32.totalorder %s25, %s26
      %p40 = scmp.eq.s32.totalorder %s18, 3
      %p41 = por %p39, %p40
      %p43 = scmp.ne.s32.totalorder %s26, %s42
      %p44 = scmp.eq.s32.totalorder %s18, 0
      %p45 = por %p43, %p44
      %s47 = sadd.s32 %s46, 1
      %p50 = scmp.eq.s32.totalorder %s12, 3
      %p51 = scmp.ne.s32.totalorder %s46, %s48
      %p52 = scmp.eq.s32.totalorder %s12, 0
      %p53 = por %p51, %p52
      %p54 = scmp.ne.s32.totalorder %s46, %s48
      %p55 = scmp.eq.s32.totalorder %s17, 3
      %p56 = por %p54, %p55
      %p57 = scmp.ne.s32.totalorder %s48, %s49
      %p58 = scmp.eq.s32.totalorder %s17, 0
      %p59 = por %p57, %p58
      %p60 = scmp.ne.s32.totalorder %s48, %s49
      %p61 = scmp.eq.s32.totalorder %s18, 3
      %p62 = por %p60, %p61
      %p64 = scmp.ne.s32.totalorder %s49, %s63
      %p65 = scmp.eq.s32.totalorder %s18, 0
      %p66 = por %p64, %p65
      %s68 = sadd.s32 %s67, 1
      %p71 = scmp.eq.s32.totalorder %s12, 3
      %p72 = scmp.ne.s32.totalorder %s67, %s69
      %p73 = scmp.eq.s32.totalorder %s12, 0
      %p74 = por %p72, %p73
      %p75 = scmp.ne.s32.totalorder %s67, %s69
      %p76 = scmp.eq.s32.totalorder %s17, 3
      %p77 = por %p75, %p76
      %p78 = scmp.ne.s32.totalorder %s69, %s70
      %p79 = scmp.eq.s32.totalorder %s17, 0
      %p80 = por %p78, %p79
      %p81 = scmp.ne.s32.totalorder %s69, %s70
      %p82 = scmp.eq.s32.totalorder %s18, 3
      %p83 = por %p81, %p82
      %p85 = scmp.ne.s32.totalorder %s70, %s84
      %p86 = scmp.eq.s32.totalorder %s18, 0
      %p87 = por %p85, %p86
      %s88 = ssub.s32 %s12, %s19
      %p89 = scmp.eq.s32.totalorder %s88, 0
      %s91 = sadd.s32 %s90, 1
      %s92 = scalar_select %p89, %s90, %s91
      %p95 = pneg %p89
      %p96 = scmp.eq.s32.totalorder %s12, 3
      %p97 = por %p95, %p96
      %p98 = scmp.ne.s32.totalorder %s90, %s93
      %p99 = scmp.eq.s32.totalorder %s12, 0
      %p100 = por %p98, %p99
      %p101 = scmp.ne.s32.totalorder %s90, %s93
      %p102 = scmp.eq.s32.totalorder %s17, 3
      %p103 = por %p101, %p102
      %p104 = scmp.ne.s32.totalorder %s93, %s94
      %p105 = scmp.eq.s32.totalorder %s17, 0
      %p106 = por %p104, %p105
      %p107 = scmp.ne.s32.totalorder %s93, %s94
      %p108 = scmp.eq.s32.totalorder %s18, 3
      %p109 = por %p107, %p108
      %p111 = scmp.ne.s32.totalorder %s94, %s110
      %p112 = scmp.eq.s32.totalorder %s18, 0
      %p113 = por %p111, %p112
      %p114 = scmp.le.s32.totalorder 1, %s12
      %p115 = scmp.lt.s32.totalorder %s12, 5
      %p116 = pnand %p114, %p115
      %p117 = pneg %p116
      // Predicated region
      $region9: #{tpu_custom_call.1} parent=5 // pred_check
        _
      $region10: #{tpu_custom_call.1} parent=5 // pred_check_branch
        %119 = sbr.rel (%p116) target = $region12
      $region11: #{tpu_custom_call.1} parent=5 // pred_region
        %s120 = ssub.s32 %s12, 1
        // Predicated region
        $region13: #{tpu_custom_call.1} parent=11 // pred_check
          %p121 = pneg %p59
        $region14: #{tpu_custom_call.1} parent=11 // pred_check_branch
          %123 = sbr.rel (%p121) target = $region16
        $region15: #{tpu_custom_call.1} parent=11 // pred_region
          _
        $region16: #{tpu_custom_call.1} parent=11 // pred_fallthru
          _
        // Predicated region
        $region17: #{tpu_custom_call.1} parent=11 // pred_check
          %p124 = pneg %p80
        $region18: #{tpu_custom_call.1} parent=11 // pred_check_branch
          %126 = sbr.rel (%p124) target = $region20
        $region19: #{tpu_custom_call.1} parent=11 // pred_region
          _
        $region20: #{tpu_custom_call.1} parent=11 // pred_fallthru
          _
      $region12: #{tpu_custom_call.1} parent=5 // pred_fallthru
        _
      %p127 = scmp.lt.s32.totalorder %s12, 4
      // Predicated region
      $region21: #{tpu_custom_call.1} parent=5 // pred_check
        %p128 = pneg %p127
      $region22: #{tpu_custom_call.1} parent=5 // pred_check_branch
        %130 = sbr.rel (%p128) target = $region24
      $region23: #{tpu_custom_call.1} parent=5 // pred_region
        // Predicated region
        $region25: #{tpu_custom_call.1} parent=23 // pred_check
          %p131 = pneg %p32
        $region26: #{tpu_custom_call.1} parent=23 // pred_check_branch
          %133 = sbr.rel (%p131) target = $region28
        $region27: #{tpu_custom_call.1} parent=23 // pred_region
          %s134 = smul.u32 16, %s12
          %p135 = scmp.lt.s32.totalorder %s134, 63
          %s136 = scalar_select %p135, %s134, 63
          %s137 = smul.addr %s136, 4
          %s138 = scalar_lea.vmem %s0, %s137
          %s139 = smul.u32 16, %s12
        $region28: #{tpu_custom_call.1} parent=23 // pred_fallthru
          _
      $region24: #{tpu_custom_call.1} parent=5 // pred_fallthru
        _
      %p140 = scmp.le.s32.totalorder 1, %s12
      %p141 = scmp.lt.s32.totalorder %s12, 5
      %p142 = pnand %p140, %p141
      %p143 = pneg %p142
      // Predicated region
      $region29: #{tpu_custom_call.1} parent=5 // pred_check
        _
      $region30: #{tpu_custom_call.1} parent=5 // pred_check_branch
        %145 = sbr.rel (%p142) target = $region32
      $region31: #{tpu_custom_call.1} parent=5 // pred_region
        %s146 = ssub.s32 %s12, 1
        %s147 = smul.u32 16, %s17
        %p148 = scmp.lt.s32.totalorder %s147, 63
        %s149 = scalar_select %p148, %s147, 63
        %s150 = smul.addr %s149, 4
        %s151 = scalar_lea.vmem %s0, %s150
        %p152 = pneg %p38
        %p153 = pneg %p35
        %p154 = pneg %p59
        %p155 = pneg %p56
        %p156 = pneg %p80
        %p157 = pneg %p77
        %p158 = pneg %p106
        %p159 = pneg %p103
        %s160 = sand.u32 %s93, 1
        %s161 = scalar_lea.sflag [#allocation3], %s160
        %s162 = sand.u32 %s93, 1
        %s163 = smul.addr %s162, 128
        %s164 = scalar_lea.vmem [#allocation2], %s163
        %s165 = smul.u32 16, %s17
        %p166 = scmp.lt.s32.totalorder %s165, 63
        %s167 = scalar_select %p166, %s165, 63
        %s168 = smul.addr %s167, 4
        %s169 = scalar_lea.vmem %s0, %s168
        %s170 = smul.u32 16, %s17
        %s171 = smul.u32 16, %s17
        %v173 = vld [vmem:[%s169] sm:$0xf]
        %v174 = vld [vmem:[%s169 + $0x4] sm:$0xf]
        %v175 = vld [vmem:[%s169 + $0x8] sm:$0xf]
        %v176 = vld [vmem:[%s169 + $0xc] sm:$0xf]
        %v177 = vld [vmem:[%s169 + $0x10] sm:$0xf]
        %v178 = vld [vmem:[%s169 + $0x14] sm:$0xf]
        %v179 = vld [vmem:[%s169 + $0x18] sm:$0xf]
        %v180 = vld [vmem:[%s169 + $0x1c] sm:$0xf]
        %v181 = vld [vmem:[%s169 + $0x20] sm:$0xf]
        %v182 = vld [vmem:[%s169 + $0x24] sm:$0xf]
        %v183 = vld [vmem:[%s169 + $0x28] sm:$0xf]
        %v184 = vld [vmem:[%s169 + $0x2c] sm:$0xf]
        %v185 = vld [vmem:[%s169 + $0x30] sm:$0xf]
        %v186 = vld [vmem:[%s169 + $0x34] sm:$0xf]
        %v187 = vld [vmem:[%s169 + $0x38] sm:$0xf]
        %v188 = vld [vmem:[%s169 + $0x3c] sm:$0xf]
        %v189 = vld [vmem:[%s1] sm:$0xf]
        %v190 = vld [vmem:[%s1 + $0x4] sm:$0xf]
        %v191 = vld [vmem:[%s1 + $0x8] sm:$0xf]
        %v192 = vld [vmem:[%s1 + $0xc] sm:$0xf]
        %v193 = vld [vmem:[%s1 + $0x10] sm:$0x3]
        %v194 = vld [vmem:[%s2] sm:$0x1]
        %v196 = vperm.slane %v194, 0
        %v214 = vunpack.c.l.b16 %v173
        %v215 = vunpack.c.l.b16 %v174
        %v216 = vunpack.c.l.b16 %v175
        %v217 = vunpack.c.l.b16 %v176
        %v218 = vunpack.c.l.b16 %v177
        %v219 = vunpack.c.l.b16 %v178
        %v220 = vunpack.c.l.b16 %v179
        %v221 = vunpack.c.l.b16 %v180
        %v222 = vunpack.c.l.b16 %v181
        %v223 = vunpack.c.l.b16 %v182
        %v224 = vunpack.c.l.b16 %v183
        %v225 = vunpack.c.l.b16 %v184
        %v226 = vunpack.c.l.b16 %v185
        %v227 = vunpack.c.l.b16 %v186
        %v228 = vunpack.c.l.b16 %v187
        %v229 = vunpack.c.l.b16 %v188
        %v230 = vpack.c.b16 %v215, %v214
        %v231 = vpack.c.b16 %v217, %v216
        %v232 = vpack.c.b16 %v219, %v218
        %v233 = vpack.c.b16 %v221, %v220
        %v234 = vpack.c.b16 %v223, %v222
        %v235 = vpack.c.b16 %v225, %v224
        %v236 = vpack.c.b16 %v227, %v226
        %v237 = vpack.c.b16 %v229, %v228
        %v243 = vunpack.c.l.b16 %v189
        %v244 = vunpack.c.l.b16 %v190
        %v245 = vunpack.c.l.b16 %v191
        %v246 = vunpack.c.l.b16 %v192
        %v247 = vunpack.c.l.b16 %v193
        %v248 = vpack.c.b16 %v244, %v243
        %v249 = vpack.c.b16 %v246, %v245
        %v250 = vpack.c.b16 %v247, %v247
        %vm253 = vcmask 293888
        %v255 = vsel %vm253, %v230, 0
        %v258 = vsel %vm253, %v231, 0
        %v261 = vsel %vm253, %v232, 0
        %v264 = vsel %vm253, %v233, 0
        %v267 = vsel %vm253, %v234, 0
        %v270 = vsel %vm253, %v235, 0
        %v273 = vsel %vm253, %v236, 0
        %v276 = vsel %vm253, %v237, 0
        %vm278 = vcmask 1041408
        %v280 = vsel %vm278, %v250, 0
        %282 = vmatpush.bf16.msra.mxu0 0
        %283 = vmatpush.bf16.msra.mxu0 0
        %284 = vmatpush.bf16.msra.mxu0 0
        %285 = vmatpush.bf16.msra.mxu0 0
        %286 = vmatpush.bf16.msra.mxu0 0
        %287 = vmatpush.bf16.msra.mxu0 %v280
        %288 = vmatpush.bf16.msra.mxu0 %v249
        %289 = vmatpush.bf16.msra.mxu0 %v248
        %290 = vmatmul.bf16.gmra.mxu0 %v255
        %v291 = vpop.f32.mrf.mxu0
        %v292 = vadd.f32 %v196, %v291
        %v293 = vpop.f32.mrf.mxu0
        %v294 = vadd.f32 %v196, %v293
        %295 = vmatmul.bf16.gmra.mxu0 %v258
        %v296 = vpop.f32.mrf.mxu0
        %v297 = vadd.f32 %v196, %v296
        %v298 = vpop.f32.mrf.mxu0
        %v299 = vadd.f32 %v196, %v298
        %300 = vmatmul.bf16.gmra.mxu0 %v261
        %v301 = vpop.f32.mrf.mxu0
        %v302 = vadd.f32 %v196, %v301
        %v303 = vpop.f32.mrf.mxu0
        %v304 = vadd.f32 %v196, %v303
        %305 = vmatmul.bf16.gmra.mxu0 %v264
        %v306 = vpop.f32.mrf.mxu0
        %v307 = vadd.f32 %v196, %v306
        %v308 = vpop.f32.mrf.mxu0
        %v309 = vadd.f32 %v196, %v308
        %310 = vmatmul.bf16.gmra.mxu0 %v267
        %v311 = vpop.f32.mrf.mxu0
        %v312 = vadd.f32 %v196, %v311
        %v313 = vpop.f32.mrf.mxu0
        %v314 = vadd.f32 %v196, %v313
        %315 = vmatmul.bf16.gmra.mxu0 %v270
        %v316 = vpop.f32.mrf.mxu0
        %v317 = vadd.f32 %v196, %v316
        %v318 = vpop.f32.mrf.mxu0
        %v319 = vadd.f32 %v196, %v318
        %320 = vmatmul.bf16.gmra.mxu0 %v273
        %v321 = vpop.f32.mrf.mxu0
        %v322 = vadd.f32 %v196, %v321
        %v323 = vpop.f32.mrf.mxu0
        %v324 = vadd.f32 %v196, %v323
        %325 = vmatmul.bf16.gmra.mxu0 %v276
        %v326 = vpop.f32.mrf.mxu0
        %v327 = vadd.f32 %v196, %v326
        %v328 = vpop.f32.mrf.mxu0
        %v329 = vadd.f32 %v196, %v328
        %330 = vdwg.mxu0
        %331 = vst [vmem:[%s164] sm:$0xff] %v292
        %332 = vst [vmem:[%s164 + $0x8] sm:$0xff] %v294
        %333 = vst [vmem:[%s164 + $0x10] sm:$0xff] %v297
        %334 = vst [vmem:[%s164 + $0x18] sm:$0xff] %v299
        %335 = vst [vmem:[%s164 + $0x20] sm:$0xff] %v302
        %336 = vst [vmem:[%s164 + $0x28] sm:$0xff] %v304
        %337 = vst [vmem:[%s164 + $0x30] sm:$0xff] %v307
        %338 = vst [vmem:[%s164 + $0x38] sm:$0xff] %v309
        %339 = vst [vmem:[%s164 + $0x40] sm:$0xff] %v312
        %340 = vst [vmem:[%s164 + $0x48] sm:$0xff] %v314
        %341 = vst [vmem:[%s164 + $0x50] sm:$0xff] %v317
        %342 = vst [vmem:[%s164 + $0x58] sm:$0xff] %v319
        %343 = vst [vmem:[%s164 + $0x60] sm:$0xff] %v322
        %344 = vst [vmem:[%s164 + $0x68] sm:$0xff] %v324
        %345 = vst [vmem:[%s164 + $0x70] sm:$0xff] %v327
        %346 = vst [vmem:[%s164 + $0x78] sm:$0xff] %v329
        %s347 = sand.u32 %s93, 1
        %s348 = scalar_lea.sflag [#allocation3], %s347
        %s349 = sand.u32 %s93, 1
        %s350 = smul.addr %s349, 128
        %s351 = scalar_lea.vmem [#allocation2], %s350
        // Predicated region
        $region33: #{tpu_custom_call.1} parent=31 // pred_check
          %p352 = pneg %p103
        $region34: #{tpu_custom_call.1} parent=31 // pred_check_branch
          %354 = sbr.rel (%p352) target = $region36
        $region35: #{tpu_custom_call.1} parent=31 // pred_region
          %s355 = smul.u32 16, %s17
          %357 = vsyncadd %s348, 0
          %s358 = smul.addr %s355, 8
          %s359 = scalar_lea.hbm %s3, %s358
          %s360 = sshll.u32 %s351, 4
          %s361 = int_to_ptr.vmem [resolvable:$true] %s360
          %s362 = sshll.u32 %s359, 4
          %s363 = int_to_ptr.hbm [resolvable:$true] %s362
          %368 = dma.vmem_to_hbm [thread:$0]  %s361, 2048, %s363, %s348, 128, 128, 8
        $region36: #{tpu_custom_call.1} parent=31 // pred_fallthru
          _
      $region32: #{tpu_custom_call.1} parent=5 // pred_fallthru
        _
      %p369 = scmp.le.s32.totalorder 2, %s12
      // Predicated region
      $region37: #{tpu_custom_call.1} parent=5 // pred_check
        %p370 = pneg %p369
      $region38: #{tpu_custom_call.1} parent=5 // pred_check_branch
        %372 = sbr.rel (%p370) target = $region40
      $region39: #{tpu_custom_call.1} parent=5 // pred_region
        %s373 = ssub.s32 %s12, 2
        // Predicated region
        $region41: #{tpu_custom_call.1} parent=39 // pred_check
          %p374 = pneg %p109
        $region42: #{tpu_custom_call.1} parent=39 // pred_check_branch
          %376 = sbr.rel (%p374) target = $region44
        $region43: #{tpu_custom_call.1} parent=39 // pred_region
          %s377 = sand.u32 %s94, 1
          %s378 = scalar_lea.sflag [#allocation3], %s377
          %s379 = sand.u32 %s94, 1
          %s380 = smul.addr %s379, 128
          %s381 = scalar_lea.vmem [#allocation2], %s380
          %383 = dma.done %s378, 2048
        $region44: #{tpu_custom_call.1} parent=39 // pred_fallthru
          _
      $region40: #{tpu_custom_call.1} parent=5 // pred_fallthru
        _
    $region6: #{tpu_custom_call.1} parent=1 // loop_footer
      %s16 = sadd.s32 1, %s12
    $region7: #{tpu_custom_call.1} parent=1 // loop_footer_branch
      %11 = sbr.rel target = $region3
    $region8: #{tpu_custom_call.1} parent=1 // loop_exit
      _
    %384 = vsyncpa [#allocation3], 1
    %s385 = scalar_lea.sflag [#allocation3], 1
    %386 = vsyncpa %s385, 1

</llo_original>
